<compile_context>
chip_gen: v6e
topology: v6e:2x2x1
jax: 0.10.0
libtpu: 0.0.40
codegen_flags: <defaults>
</compile_context>

<pallas_src>
import functools

import jax
import jax.numpy as jnp
from jax.experimental import pallas as pl
from jax.experimental.pallas import tpu as pltpu


def _round_up(x: int, m: int) -> int:
    return ((x + m - 1) // m) * m


def _largest_aligned_divisor(dim_a: int, align: int, cap: int) -> int:
    """Largest multiple of `align` that divides dim_a and is <= cap."""
    cap_eff = max(align, (min(cap, dim_a) // align) * align)
    for t in range(cap_eff, align - 1, -align):
        if dim_a % t == 0:
            return t
    return align


def _pick_tile(dim: int, align: int, cap: int) -> int:
    """Divisor-aware tile: avoids tile-size-driven over-padding.

    Picks the largest multiple-of-`align` divisor of round_up(dim, align) that
    is <= cap (zero padding beyond alignment).  If the only divisors are tiny
    (< cap/4), falls back to a full cap-sized tile and accepts the padding.
    """
    dim_a = _round_up(dim, align)
    cap_eff = max(align, (min(cap, dim_a) // align) * align)
    best = _largest_aligned_divisor(dim_a, align, cap_eff)
    if best * 4 < cap_eff:
        best = cap_eff
    return best


def _linear_kernel(x_ref, w_ref, b_ref, o_ref):
    """One (tm, tn) tile of y = x @ W^T + b, reduced over the K grid axis.

    x_ref: (tm, tk)  activations (bf16 or f32)
    w_ref: (tk, tn)  weight already in (K, N) layout -> standard MXU matmul
    b_ref: (1,  tn)  bias (f32)
    o_ref: (tm, tn)  f32 output tile; its block index (i, j) is invariant along
                     the K grid axis, so it stays VMEM-resident and doubles as
                     the accumulator (no separate scratch).
    """
    k = pl.program_id(2)

    @pl.when(k == 0)
    def _init():
        # Fold the bias into the accumulator init (saves an epilogue VPU pass).
        o_ref[...] = jnp.broadcast_to(b_ref[...], o_ref.shape).astype(o_ref.dtype)

    o_ref[...] += jnp.dot(
        x_ref[...], w_ref[...], preferred_element_type=jnp.float32
    )


# Tile caps: with bf16 inputs and the f32 output-accumulator the worst-case
# double-buffered working set is ~12 MiB, inside every generation's default
# scoped-VMEM budget (v5e 16 MiB, v6e/v7x 32 MiB).
_TM_CAP = 1024
_TN_CAP = 1024
_TK_CAP = 512


@functools.partial(jax.jit, static_argnames=("use_bf16",))
def basic_moe_forward(x, weight, bias, *, use_bf16: bool = True):
    """Equivalent of BasicMOE.forward(x) == F.linear(x, weight, bias).

    x:      (..., feat_in)        float32
    weight: (feat_out, feat_in)   float32 (PyTorch layout)
    bias:   (feat_out,)           float32
    returns (..., feat_out)       float32

    use_bf16=True (default) casts x/W to bf16 for the MXU while accumulating in
    f32 (matches nn.Linear to bf16 tolerance).  use_bf16=False is bit-faithful
    fp32 (slower multi-pass MXU path).
    """
    orig_shape = x.shape
    x2 = x.reshape(-1, orig_shape[-1])
    M, K = x2.shape
    N = weight.shape[0]

    cdt = jnp.bfloat16 if use_bf16 else jnp.float32

    # --- Divisor-aware tiling (minimal padding) -----------------------------
    tm = _pick_tile(M, 8, _TM_CAP)
    tn = _pick_tile(N, 128, _TN_CAP)
    tk = _pick_tile(K, 128, _TK_CAP)
    M_pad = _round_up(M, tm)
    N_pad = _round_up(N, tn)
    K_pad = _round_up(K, tk)

    # v7x has 2 TensorCores: ensure >= 2 blocks along a "parallel" axis so both
    # cores get work (harmless on single-core v5e/v6e).
    if (M_pad // tm) * (N_pad // tn) < 2:
        if N_pad >= 2 * 128:
            tn = _largest_aligned_divisor(N_pad, 128, N_pad // 2)
        elif M_pad >= 2 * 8:
            tm = _largest_aligned_divisor(M_pad, 8, M_pad // 2)

    # --- Operand prep: cast / transpose / pad only when needed --------------
    xw = x2 if x2.dtype == cdt else x2.astype(cdt)
    if (M_pad, K_pad) != (M, K):
        xw = jnp.pad(xw, ((0, M_pad - M), (0, K_pad - K)))

    # (K, N) layout: one O(K*N) pass fused with the cast (free when W is a jit
    # constant); guarantees no in-kernel transpose of the weight tile.
    w_kn = weight.T
    if w_kn.dtype != cdt:
        w_kn = w_kn.astype(cdt)
    if (K_pad, N_pad) != (K, N):
        w_kn = jnp.pad(w_kn, ((0, K_pad - K), (0, N_pad - N)))

    b2 = bias.astype(jnp.float32).reshape(1, N)
    if N_pad != N:
        b2 = jnp.pad(b2, ((0, 0), (0, N_pad - N)))

    gm, gn, gk = M_pad // tm, N_pad // tn, K_pad // tk
    in_itemsize = jnp.dtype(cdt).itemsize

    cost = pl.CostEstimate(
        flops=2 * M_pad * N_pad * K_pad,
        bytes_accessed=(
            gn * M_pad * K_pad * in_itemsize      # x re-streamed once per N block
            + gm * K_pad * N_pad * in_itemsize    # W re-streamed once per M block
            + gm * N_pad * 4                      # bias per M block
            + M_pad * N_pad * 4                   # output written once
        ),
        transcendentals=0,
    )

    out_p = pl.pallas_call(
        _linear_kernel,
        out_shape=jax.ShapeDtypeStruct((M_pad, N_pad), jnp.float32),
        grid_spec=pltpu.PrefetchScalarGridSpec(
            num_scalar_prefetch=0,
            grid=(gm, gn, gk),
            in_specs=[
                pl.BlockSpec((tm, tk), lambda i, j, k: (i, k)),   # x
                pl.BlockSpec((tk, tn), lambda i, j, k: (k, j)),   # W^T (K, N)
                pl.BlockSpec((1, tn), lambda i, j, k: (0, j)),    # bias
            ],
            out_specs=pl.BlockSpec((tm, tn), lambda i, j, k: (i, j)),
        ),
        compiler_params=pltpu.CompilerParams(
            dimension_semantics=("parallel", "parallel", "arbitrary"),
            vmem_limit_bytes=32 * 1024 * 1024,
        ),
        cost_estimate=cost,
    )(xw, w_kn, b2)

    out = out_p if (M_pad, N_pad) == (M, N) else out_p[:M, :N]
    return out.reshape(*orig_shape[:-1], N)


if __name__ == "__main__":
    key = jax.random.PRNGKey(0)

    def make_case(k, batch, feat_in, feat_out):
        kx, kw, kb = jax.random.split(k, 3)
        bound = 1.0 / (feat_in ** 0.5)
        weight = jax.random.uniform(kw, (feat_out, feat_in), jnp.float32, -bound, bound)
        bias = jax.random.uniform(kb, (feat_out,), jnp.float32, -bound, bound)
        x = jax.random.normal(kx, (batch, feat_in), jnp.float32)
        return x, weight, bias

    k1, k2 = jax.random.split(key)

    # Case 1: toy shapes implied by the module.  Exact-fp32 path first.
    x, weight, bias = make_case(k1, batch=8, feat_in=32, feat_out=64)
    y_ref = x @ weight.T + bias

    y32 = basic_moe_forward(x, weight, bias, use_bf16=False)
    jax.block_until_ready(y32)
    assert y32.shape == (8, 64)
    assert jnp.allclose(y32, y_ref, atol=1e-5, rtol=1e-5), "fp32 path mismatch"

    # Same case on the default bf16-MXU / f32-accumulate fast path.
    y = basic_moe_forward(x, weight, bias)
    jax.block_until_ready(y)
    assert jnp.allclose(y, y_ref, atol=3e-2, rtol=3e-2), "bf16 path mismatch (small)"

    # Case 2: non-tile-multiple shape exercising divisor-aware tiling,
    # K-axis accumulation, padding paths and the megacore split heuristic.
    x2, w2, b2 = make_case(k2, batch=640, feat_in=640, feat_out=320)
    y2 = basic_moe_forward(x2, w2, b2)
    jax.block_until_ready(y2)
    y2_ref = x2 @ w2.T + b2
    assert y2.shape == (640, 320)
    assert jnp.allclose(y2, y2_ref, atol=3e-2, rtol=3e-2), "bf16 path mismatch (tiled)"

    print("KERNEL_OK")
</pallas_src>

<mosaic_0001>
module attributes {stable_mosaic.version = 11 : i64} {
  func.func @_linear_kernel(%arg0: i32, %arg1: i32, %arg2: i32, %arg3: memref<8x128xf32, #tpu.memory_space<vmem>>, %arg4: memref<128x128xf32, #tpu.memory_space<vmem>>, %arg5: memref<1x128xf32, #tpu.memory_space<vmem>>, %arg6: memref<8x128xf32, #tpu.memory_space<vmem>>) attributes {dimension_semantics = [#tpu.dimension_semantics<parallel>, #tpu.dimension_semantics<parallel>, #tpu.dimension_semantics<arbitrary>], iteration_bounds = array<i64: 1, 1, 1>, scalar_prefetch = 0 : i64, scratch_operands = 0 : i64, tpu.core_type = #tpu.core_type<tc>, window_params = [{transform_indices = @transform_0, window_bounds = array<i64: 8, 128>}, {transform_indices = @transform_1, window_bounds = array<i64: 128, 128>}, {transform_indices = @transform_2, window_bounds = array<i64: 1, 128>}, {transform_indices = @transform_3, window_bounds = array<i64: 8, 128>}]} {
    %c0_i32 = arith.constant 0 : i32
    %0 = arith.cmpi eq, %arg2, %c0_i32 : i32
    %1 = arith.extui %0 : i1 to i32
    %c0_i32_0 = arith.constant 0 : i32
    %2 = arith.cmpi ne, %1, %c0_i32_0 : i32
    scf.if %2 {
      %c0_8 = arith.constant 0 : index
      %c0_9 = arith.constant 0 : index
      %9 = vector.load %arg5[%c0_8, %c0_9] : memref<1x128xf32, #tpu.memory_space<vmem>>, vector<1x128xf32>
      %10 = vector.shape_cast %9 : vector<1x128xf32> to vector<1x128xf32>
      %11 = vector.broadcast %10 : vector<1x128xf32> to vector<8x128xf32>
      %c0_10 = arith.constant 0 : index
      %c0_11 = arith.constant 0 : index
      %12 = vector.load %arg6[%c0_10, %c0_11] : memref<8x128xf32, #tpu.memory_space<vmem>>, vector<8x128xf32>
      tpu.vector_store %arg6[%c0_10, %c0_11], %11 {strides = array<i32>} : memref<8x128xf32, #tpu.memory_space<vmem>>, vector<8x128xf32>,
    } else {
    }
    %c0 = arith.constant 0 : index
    %c0_1 = arith.constant 0 : index
    %3 = vector.load %arg6[%c0, %c0_1] : memref<8x128xf32, #tpu.memory_space<vmem>>, vector<8x128xf32>
    %c0_2 = arith.constant 0 : index
    %c0_3 = arith.constant 0 : index
    %4 = vector.load %arg3[%c0_2, %c0_3] : memref<8x128xf32, #tpu.memory_space<vmem>>, vector<8x128xf32>
    %c0_4 = arith.constant 0 : index
    %c0_5 = arith.constant 0 : index
    %5 = vector.load %arg4[%c0_4, %c0_5] : memref<128x128xf32, #tpu.memory_space<vmem>>, vector<128x128xf32>
    %cst = arith.constant dense<0.000000e+00> : vector<8x128xf32>
    %6 = tpu.matmul %4, %5, %cst {dimension_numbers = #tpu.dot_dimension_numbers<[1], [0], [0], [1], [0, 0, 1, 1], [], []>} : vector<8x128xf32>, vector<128x128xf32>, vector<8x128xf32> -> vector<8x128xf32>
    %7 = arith.addf %3, %6 : vector<8x128xf32>
    %c0_6 = arith.constant 0 : index
    %c0_7 = arith.constant 0 : index
    %8 = vector.load %arg6[%c0_6, %c0_7] : memref<8x128xf32, #tpu.memory_space<vmem>>, vector<8x128xf32>
    tpu.vector_store %arg6[%c0_6, %c0_7], %7 {strides = array<i32>} : memref<8x128xf32, #tpu.memory_space<vmem>>, vector<8x128xf32>,
    return
  }
  func.func @transform_0(%arg0: i32, %arg1: i32, %arg2: i32) -> (i32, i32) {
    %c0_i32 = arith.constant 0 : i32
    return %arg0, %arg2 : i32, i32
  }
  func.func @transform_1(%arg0: i32, %arg1: i32, %arg2: i32) -> (i32, i32) {
    %c0_i32 = arith.constant 0 : i32
    return %arg2, %arg1 : i32, i32
  }
  func.func @transform_2(%arg0: i32, %arg1: i32, %arg2: i32) -> (i32, i32) {
    %c0_i32 = arith.constant 0 : i32
    %c0_i32_0 = arith.constant 0 : i32
    return %c0_i32, %arg1 : i32, i32
  }
  func.func @transform_3(%arg0: i32, %arg1: i32, %arg2: i32) -> (i32, i32) {
    %c0_i32 = arith.constant 0 : i32
    return %arg0, %arg1 : i32, i32
  }
}

</mosaic_0001>

<llo_original>
// kernel: basic_moe_forward.1
$region0: #{basic_moe_forward.1}
  #allocation0 [shape = 'u32[]', space=smem, size = 0x4, offset = 0x4, fixed_abs, tag = 'smem constant byte address 0x4 - core index']
  #allocation1 [shape = 'u32[144,128]{1,0:T(1,128)}', space=vmem, size = 0x12000, scoped, tag = 'internal scratch']
  %s0 = inlined_call_operand.vmem [shape: f32[8,128], index: 0, kind: input, shape index: {}]
  %s1 = inlined_call_operand.vmem [shape: f32[128,128], index: 1, kind: input, shape index: {}]
  %s2 = inlined_call_operand.vmem [shape: f32[1,128], index: 2, kind: input, shape index: {}]
  %s3 = inlined_call_operand.hbm [shape: f32[8,128], index: 3, kind: output, shape index: {}]
  %s4 = sld [smem:[#allocation0]]
  $region26: #{basic_moe_forward.1} parent=0
    _
  %s6 = ssub.s32 1, %s4
  %s7 = scalar_select 0, %s6, %s4
  $region1: #{basic_moe_forward.1} parent=0
    #allocation2 [shape = 'u8[4096]{0}', space=vmem, size = 0x1000, scoped, tag = 'output window, operand 0, single buffered']
    #allocation3 [shape = 's32[1]{0}', space=sflag, size = 0x4, scoped, tag = 'scoped memory for basic_moe_forward.1']
    %8 = vsyncpa [#allocation3], 0
    // Predicated region
    $region2: #{basic_moe_forward.1} parent=1 // pred_check
      _
    $region3: #{basic_moe_forward.1} parent=1 // pred_check_branch
      %10 = sbr.rel (0) target = $region5
    $region4: #{basic_moe_forward.1} parent=1 // pred_region
      _
    $region5: #{basic_moe_forward.1} parent=1 // pred_fallthru
      _
    // Predicated region
    $region6: #{basic_moe_forward.1} parent=1 // pred_check
      _
    $region7: #{basic_moe_forward.1} parent=1 // pred_check_branch
      %12 = sbr.rel (0) target = $region9
    $region8: #{basic_moe_forward.1} parent=1 // pred_region
      _
    $region9: #{basic_moe_forward.1} parent=1 // pred_fallthru
      _
    // Predicated region
    $region10: #{basic_moe_forward.1} parent=1 // pred_check
      _
    $region11: #{basic_moe_forward.1} parent=1 // pred_check_branch
      %14 = sbr.rel (0) target = $region13
    $region12: #{basic_moe_forward.1} parent=1 // pred_region
      _
    $region13: #{basic_moe_forward.1} parent=1 // pred_fallthru
      _
    %p15 = scmp.eq.s32.totalorder 0, 0
    // Predicated region
    $region14: #{basic_moe_forward.1} parent=1 // pred_check
      %p16 = pneg %p15
    $region15: #{basic_moe_forward.1} parent=1 // pred_check_branch
      %18 = sbr.rel (%p16) target = $region17
    $region16: #{basic_moe_forward.1} parent=1 // pred_region
      %v19 = vld [vmem:[%s2] sm:$0x1]
      %v21 = vlaneseq
      %v22 = vshrl.u32 %v21, 7
      %v23 = vsub.s32 0, %v22
      %v24 = vrot.slane %v19, %v23
      %26 = vst [vmem:[#allocation2] sm:$0xff] %v24
    $region17: #{basic_moe_forward.1} parent=1 // pred_fallthru
      _
    %v27 = vld [vmem:[#allocation2] sm:$0xff]
    %v28 = vld [vmem:[%s0] sm:$0xff]
    %v29 = vld [vmem:[%s1] sm:$0xff]
    %v30 = vld [vmem:[%s1 + $0x8] sm:$0xff]
    %v31 = vld [vmem:[%s1 + $0x10] sm:$0xff]
    %v32 = vld [vmem:[%s1 + $0x18] sm:$0xff]
    %v33 = vld [vmem:[%s1 + $0x20] sm:$0xff]
    %v34 = vld [vmem:[%s1 + $0x28] sm:$0xff]
    %v35 = vld [vmem:[%s1 + $0x30] sm:$0xff]
    %v36 = vld [vmem:[%s1 + $0x38] sm:$0xff]
    %v37 = vld [vmem:[%s1 + $0x40] sm:$0xff]
    %v38 = vld [vmem:[%s1 + $0x48] sm:$0xff]
    %v39 = vld [vmem:[%s1 + $0x50] sm:$0xff]
    %v40 = vld [vmem:[%s1 + $0x58] sm:$0xff]
    %v41 = vld [vmem:[%s1 + $0x60] sm:$0xff]
    %v42 = vld [vmem:[%s1 + $0x68] sm:$0xff]
    %v43 = vld [vmem:[%s1 + $0x70] sm:$0xff]
    %v44 = vld [vmem:[%s1 + $0x78] sm:$0xff]
    %45 = vmatprep.subr.mxu0 0.0
    %46 = vmatpush1.msra.mxu0 %v44
    %47 = vmatprep.subr.mxu0 0.0
    %48 = vmatpush1.msra.mxu0 %v43
    %49 = vmatprep.subr.mxu0 0.0
    %50 = vmatpush1.msra.mxu0 %v42
    %51 = vmatprep.subr.mxu0 0.0
    %52 = vmatpush1.msra.mxu0 %v41
    %53 = vmatprep.subr.mxu0 0.0
    %54 = vmatpush1.msra.mxu0 %v40
    %55 = vmatprep.subr.mxu0 0.0
    %56 = vmatpush1.msra.mxu0 %v39
    %57 = vmatprep.subr.mxu0 0.0
    %58 = vmatpush1.msra.mxu0 %v38
    %59 = vmatprep.subr.mxu0 0.0
    %60 = vmatpush1.msra.mxu0 %v37
    %61 = vmatprep.subr.mxu0 0.0
    %62 = vmatpush1.msra.mxu0 %v36
    %63 = vmatprep.subr.mxu0 0.0
    %64 = vmatpush1.msra.mxu0 %v35
    %65 = vmatprep.subr.mxu0 0.0
    %66 = vmatpush1.msra.mxu0 %v34
    %67 = vmatprep.subr.mxu0 0.0
    %68 = vmatpush1.msra.mxu0 %v33
    %69 = vmatprep.subr.mxu0 0.0
    %70 = vmatpush1.msra.mxu0 %v32
    %71 = vmatprep.subr.mxu0 0.0
    %72 = vmatpush1.msra.mxu0 %v31
    %73 = vmatprep.subr.mxu0 0.0
    %74 = vmatpush1.msra.mxu0 %v30
    %75 = vmatprep.subr.mxu0 0.0
    %76 = vmatpush1.msra.mxu0 %v29
    %77 = vmatprep.subr.mxu0 0.0
    %78 = vmatpush2.msra.mxu0 0.0
    %79 = vmatprep.subr.mxu0 0.0
    %80 = vmatpush2.msra.mxu0 0.0
    %81 = vmatprep.subr.mxu0 0.0
    %82 = vmatpush2.msra.mxu0 0.0
    %83 = vmatprep.subr.mxu0 0.0
    %84 = vmatpush2.msra.mxu0 0.0
    %85 = vmatprep.subr.mxu0 0.0
    %86 = vmatpush2.msra.mxu0 0.0
    %87 = vmatprep.subr.mxu0 0.0
    %88 = vmatpush2.msra.mxu0 0.0
    %89 = vmatprep.subr.mxu0 0.0
    %90 = vmatpush2.msra.mxu0 0.0
    %91 = vmatprep.subr.mxu0 0.0
    %92 = vmatpush2.msra.mxu0 0.0
    %93 = vmatprep.subr.mxu0 0.0
    %94 = vmatpush2.msra.mxu0 0.0
    %95 = vmatprep.subr.mxu0 0.0
    %96 = vmatpush2.msra.mxu0 0.0
    %97 = vmatprep.subr.mxu0 0.0
    %98 = vmatpush2.msra.mxu0 0.0
    %99 = vmatprep.subr.mxu0 0.0
    %100 = vmatpush2.msra.mxu0 0.0
    %101 = vmatprep.subr.mxu0 0.0
    %102 = vmatpush2.msra.mxu0 0.0
    %103 = vmatprep.subr.mxu0 0.0
    %104 = vmatpush2.msra.mxu0 0.0
    %105 = vmatprep.subr.mxu0 0.0
    %106 = vmatpush2.msra.mxu0 0.0
    %107 = vmatprep.subr.mxu0 0.0
    %108 = vmatpush2.msra.mxu0 0.0
    %109 = vmatprep.mubr.f32.mxu0 0.0
    %110 = vmatmul.mubr.f32.gmra.mxu0 %v28
    %v111 = vpop.f32.mrf.mxu0
    %v112 = vadd.f32 0.0, %v111
    %v113 = vpop.f32.mrf.mxu0
    %114 = vdwg.mxu0
    %v115 = vadd.f32 %v27, %v112
    %116 = vst [vmem:[#allocation2] sm:$0xff] %v115
    // Predicated region
    $region18: #{basic_moe_forward.1} parent=1 // pred_check
      _
    $region19: #{basic_moe_forward.1} parent=1 // pred_check_branch
      %118 = sbr.rel (0) target = $region21
    $region20: #{basic_moe_forward.1} parent=1 // pred_region
      %s120 = ssub.s32 128, 128
      %121 = vsyncadd [#allocation3], %s120
      %s123 = sshll.u32 [#allocation2], 4
      %s124 = int_to_ptr.vmem [resolvable:$true] %s123
      %126 = dma.vmem_to_hbm [thread:$0]  %s124, 128, %s3, [#allocation3]
    $region21: #{basic_moe_forward.1} parent=1 // pred_fallthru
      _
    // Predicated region
    $region22: #{basic_moe_forward.1} parent=1 // pred_check
      _
    $region23: #{basic_moe_forward.1} parent=1 // pred_check_branch
      %128 = sbr.rel (0) target = $region25
    $region24: #{basic_moe_forward.1} parent=1 // pred_region
      %129 = dma.done [#allocation3], 128
    $region25: #{basic_moe_forward.1} parent=1 // pred_fallthru
      _
    %130 = vsyncpa [#allocation3], 1

</llo_original>
